<compile_context>
chip_gen: v6e
topology: v6e:2x2x1
jax: 0.10.0
libtpu: 0.0.40
codegen_flags: <defaults>
</compile_context>

<pallas_src>
import jax
import jax.numpy as jnp
import numpy as np
from jax.experimental import pallas as pl
from jax.experimental.pallas import tpu as pltpu

_GRAY_W = (0.299, 0.587, 0.114)           # rgb -> grayscale weights
_NORM_MEAN = (0.485, 0.456, 0.406)        # Normalize(mean=...)
_NORM_STD = (0.229, 0.224, 0.225)         # Normalize(std=...)
_SIXTH = 1.0 / 6.0


def _make_aug2_kernel(inv_hw):
    """Build the per-sample kernel with the true 1/(H*W) baked in."""
    w0, w1, w2 = _GRAY_W
    m0, m1, m2 = _NORM_MEAN
    is0, is1, is2 = (1.0 / s for s in _NORM_STD)

    def kernel(params_ref, img_ref, out_ref):
        """params_ref: SMEM (N*8,) f32 flat table, per sample:
             [apply_cj, brightness_f, contrast_f, saturation_f, hue_f,
              gray_flag, solarize_flag, unused]
           img_ref / out_ref: VMEM (3, HP, 128) f32 tile of one sample.
        """
        n = pl.program_id(0)
        base = n * 8
        apply_hue = params_ref[base + 0]
        bf = params_ref[base + 1]
        cf = params_ref[base + 2]
        sf = params_ref[base + 3]
        hf = params_ref[base + 4]
        gray_flag = params_ref[base + 5]
        sol_flag = params_ref[base + 6]

        # ------------- ColorJitter(0.4, 0.4, 0.2, 0.1, p=0.8) -------------
        # TODO(synk): kornia applies the four jitters in a random order per
        # call; a fixed b -> c -> s -> h order is used here.
        x = jnp.clip(img_ref[...] * bf, 0.0, 1.0)          # brightness
        r, g, b = x[0], x[1], x[2]                          # (HP, 128) tiles

        # contrast: blend with scalar mean of the grayscale image.  Padded
        # pixels are exactly 0 here, so sum * (1/HW_true) is the valid mean.
        gray = w0 * r + w1 * g + w2 * b
        g_mean = jnp.sum(gray) * inv_hw
        c_off = (1.0 - cf) * g_mean
        r = jnp.clip(cf * r + c_off, 0.0, 1.0)
        g = jnp.clip(cf * g + c_off, 0.0, 1.0)
        b = jnp.clip(cf * b + c_off, 0.0, 1.0)

        # saturation: blend with the grayscale image
        gray = w0 * r + w1 * g + w2 * b
        s_c = 1.0 - sf
        r = jnp.clip(sf * r + s_c * gray, 0.0, 1.0)
        g = jnp.clip(sf * g + s_c * gray, 0.0, 1.0)
        b = jnp.clip(sf * b + s_c * gray, 0.0, 1.0)

        out_ref[0] = r
        out_ref[1] = g
        out_ref[2] = b

        # hue: rgb -> hsv -> shift -> rgb, only for samples that jitter
        @pl.when(apply_hue > 0.5)
        def _hue():
            y = out_ref[...]
            r_, g_, b_ = y[0], y[1], y[2]
            maxc = jnp.maximum(jnp.maximum(r_, g_), b_)
            minc = jnp.minimum(jnp.minimum(r_, g_), b_)
            v = maxc
            cr = maxc - minc
            sat = cr / jnp.where(maxc == 0.0, 1.0, maxc)
            inv_cr = 1.0 / jnp.where(cr == 0.0, 1.0, cr)
            rc = (maxc - r_) * inv_cr
            gc = (maxc - g_) * inv_cr
            bc = (maxc - b_) * inv_cr
            # hue in "sixths of a turn", piecewise by argmax (continuous)
            h6 = jnp.where(maxc == r_, bc - gc,
                           jnp.where(maxc == g_, 2.0 + rc - bc, 4.0 + gc - rc))
            h6 = h6 + (6.0 * hf + 6.0)     # hue shift; +6 keeps it positive
            vs = v * sat

            def chan(off):
                # closed-form hsv->rgb ("K formula"); periodic, no sector masks
                k = off + h6
                k = k - 6.0 * jnp.floor(k * _SIXTH)   # mod 6 on a positive arg
                return v - vs * jnp.clip(jnp.minimum(k, 4.0 - k), 0.0, 1.0)

            out_ref[0] = chan(5.0)
            out_ref[1] = chan(3.0)
            out_ref[2] = chan(1.0)

        # ---- RandomGrayscale(p=0.2) + RandomSolarize(0,0,p=0.2) + ----------
        # ---- Normalize(mean,std): fused into one vreg pass -----------------
        y = out_ref[...]
        r, g, b = y[0], y[1], y[2]

        do_gray = gray_flag > 0.5
        gry = w0 * r + w1 * g + w2 * b
        r = jnp.where(do_gray, gry, r)
        g = jnp.where(do_gray, gry, g)
        b = jnp.where(do_gray, gry, b)

        do_sol = sol_flag > 0.5
        r = jnp.where(do_sol, jnp.where(r < 0.5, r, 1.0 - r), r)
        g = jnp.where(do_sol, jnp.where(g < 0.5, g, 1.0 - g), g)
        b = jnp.where(do_sol, jnp.where(b < 0.5, b, 1.0 - b), b)

        out_ref[0] = (r - m0) * is0
        out_ref[1] = (g - m1) * is1
        out_ref[2] = (b - m2) * is2

    return kernel


def aug2_forward(img, params):
    """img: (N, 3, H, W) f32 in [0,1]; params: (N, 8) f32 per-sample values."""
    N, C, H, W = img.shape
    assert C == 3, "aug2 expects RGB input"
    HW = H * W
    # Pad each channel to a multiple of 1024 pixels so the (HP, 128) tile is
    # made of full (8, 128) vregs.  Zero padding keeps the contrast mean exact
    # (padded gray contributions are 0); padded outputs are sliced off below.
    HW_pad = ((HW + 1023) // 1024) * 1024
    HP = HW_pad // 128

    x = img.reshape(N, C, HW).astype(jnp.float32)
    if HW_pad != HW:
        x = jnp.pad(x, ((0, 0), (0, 0), (0, HW_pad - HW)))
    x = x.reshape(N, C, HP, 128)
    p = jnp.asarray(params, jnp.float32).reshape(-1)     # flat 1-D SMEM table

    kernel = _make_aug2_kernel(1.0 / float(HW))
    out = pl.pallas_call(
        kernel,
        out_shape=jax.ShapeDtypeStruct((N, C, HP, 128), jnp.float32),
        grid_spec=pltpu.PrefetchScalarGridSpec(
            num_scalar_prefetch=1,
            grid=(N,),
            in_specs=[pl.BlockSpec((None, C, HP, 128),
                                   lambda n, prm: (n, 0, 0, 0))],
            out_specs=pl.BlockSpec((None, C, HP, 128),
                                   lambda n, prm: (n, 0, 0, 0)),
        ),
        compiler_params=pltpu.CompilerParams(
            dimension_semantics=("parallel",)),
    )(p, x)
    out = out.reshape(N, C, HW_pad)[:, :, :HW]
    return out.reshape(N, C, H, W)


def sample_aug_params(keys, n):
    """Deterministic per-sample augmentation parameters (kornia ranges)."""
    apply_cj = (jax.random.uniform(keys[0], (n,)) < 0.8).astype(jnp.float32)
    bf = jax.random.uniform(keys[1], (n,), minval=0.6, maxval=1.4)   # 1 +- 0.4
    cf = jax.random.uniform(keys[2], (n,), minval=0.6, maxval=1.4)   # 1 +- 0.4
    sf = jax.random.uniform(keys[3], (n,), minval=0.8, maxval=1.2)   # 1 +- 0.2
    hf = jax.random.uniform(keys[4], (n,), minval=-0.1, maxval=0.1)  # +- 0.1
    gray_flag = (jax.random.uniform(keys[5], (n,)) < 0.2).astype(jnp.float32)
    sol_flag = (jax.random.uniform(keys[6], (n,)) < 0.2).astype(jnp.float32)
    # fold the "apply color jitter" gate into identity parameters
    bf = jnp.where(apply_cj > 0, bf, 1.0)
    cf = jnp.where(apply_cj > 0, cf, 1.0)
    sf = jnp.where(apply_cj > 0, sf, 1.0)
    hf = jnp.where(apply_cj > 0, hf, 0.0)
    zeros = jnp.zeros((n,), jnp.float32)
    return jnp.stack([apply_cj, bf, cf, sf, hf, gray_flag, sol_flag, zeros],
                     axis=1).astype(jnp.float32)


def aug2_reference(img, params):
    """Pure-JAX mirror of the kernel math, for correctness checking."""
    N, C, H, W = img.shape
    x = img.reshape(N, C, H * W).astype(jnp.float32)
    ap, bf, cf, sf, hf, gfl, sfl = [params[:, k][:, None] for k in range(7)]
    w0, w1, w2 = _GRAY_W

    x = jnp.clip(x * bf[:, None], 0.0, 1.0)
    r, g, b = x[:, 0], x[:, 1], x[:, 2]                    # (N, HW)

    gray = w0 * r + w1 * g + w2 * b
    g_mean = jnp.mean(gray, axis=-1, keepdims=True)
    c_off = (1.0 - cf) * g_mean
    r = jnp.clip(cf * r + c_off, 0.0, 1.0)
    g = jnp.clip(cf * g + c_off, 0.0, 1.0)
    b = jnp.clip(cf * b + c_off, 0.0, 1.0)

    gray = w0 * r + w1 * g + w2 * b
    s_c = 1.0 - sf
    r = jnp.clip(sf * r + s_c * gray, 0.0, 1.0)
    g = jnp.clip(sf * g + s_c * gray, 0.0, 1.0)
    b = jnp.clip(sf * b + s_c * gray, 0.0, 1.0)

    maxc = jnp.maximum(jnp.maximum(r, g), b)
    minc = jnp.minimum(jnp.minimum(r, g), b)
    v = maxc
    cr = maxc - minc
    sat = cr / jnp.where(maxc == 0.0, 1.0, maxc)
    inv_cr = 1.0 / jnp.where(cr == 0.0, 1.0, cr)
    rc = (maxc - r) * inv_cr
    gc = (maxc - g) * inv_cr
    bc = (maxc - b) * inv_cr
    h6 = jnp.where(maxc == r, bc - gc,
                   jnp.where(maxc == g, 2.0 + rc - bc, 4.0 + gc - rc))
    h6 = h6 + 6.0 * hf + 6.0
    vs = v * sat

    def chan(off):
        k = off + h6
        k = k - 6.0 * jnp.floor(k * _SIXTH)
        return v - vs * jnp.clip(jnp.minimum(k, 4.0 - k), 0.0, 1.0)

    apply = ap > 0.5
    r = jnp.where(apply, chan(5.0), r)
    g = jnp.where(apply, chan(3.0), g)
    b = jnp.where(apply, chan(1.0), b)

    gry = w0 * r + w1 * g + w2 * b
    do_gray = gfl > 0.5
    r = jnp.where(do_gray, gry, r)
    g = jnp.where(do_gray, gry, g)
    b = jnp.where(do_gray, gry, b)

    do_sol = sfl > 0.5
    r = jnp.where(do_sol, jnp.where(r < 0.5, r, 1.0 - r), r)
    g = jnp.where(do_sol, jnp.where(g < 0.5, g, 1.0 - g), g)
    b = jnp.where(do_sol, jnp.where(b < 0.5, b, 1.0 - b), b)

    r = (r - _NORM_MEAN[0]) * (1.0 / _NORM_STD[0])
    g = (g - _NORM_MEAN[1]) * (1.0 / _NORM_STD[1])
    b = (b - _NORM_MEAN[2]) * (1.0 / _NORM_STD[2])
    return jnp.stack([r, g, b], axis=1).reshape(N, C, H, W)


if __name__ == "__main__":
    N, C, H, W = 2, 3, 16, 16
    keys = jax.random.split(jax.random.PRNGKey(0), 8)
    img = jax.random.uniform(keys[0], (N, C, H, W), dtype=jnp.float32)
    params = sample_aug_params(keys[1:], N)

    out = jax.block_until_ready(aug2_forward(img, params))
    ref = aug2_reference(img, params)
    np.testing.assert_allclose(np.asarray(out), np.asarray(ref),
                               rtol=1e-3, atol=1e-3)
    print("KERNEL_OK")
</pallas_src>

<mosaic_0001>
module attributes {stable_mosaic.version = 11 : i64} {
  func.func @kernel(%arg0: i32, %arg1: memref<16xf32, #tpu.memory_space<smem>>, %arg2: memref<1x3x8x128xf32, #tpu.memory_space<vmem>>, %arg3: memref<1x3x8x128xf32, #tpu.memory_space<vmem>>) attributes {dimension_semantics = [#tpu.dimension_semantics<parallel>], iteration_bounds = array<i64: 2>, scalar_prefetch = 1 : i64, scratch_operands = 0 : i64, tpu.core_type = #tpu.core_type<tc>, window_params = [{transform_indices = @transform_0, window_bounds = array<i64: 1, 3, 8, 128>}, {transform_indices = @transform_1, window_bounds = array<i64: 1, 3, 8, 128>}]} {
    %c8_i32 = arith.constant 8 : i32
    %0 = arith.muli %arg0, %c8_i32 : i32
    %c0_i32 = arith.constant 0 : i32
    %1 = arith.addi %0, %c0_i32 : i32
    %2 = arith.index_cast %1 : i32 to index
    %3 = memref.load %arg1[%2] : memref<16xf32, #tpu.memory_space<smem>>
    %c1_i32 = arith.constant 1 : i32
    %4 = arith.addi %0, %c1_i32 : i32
    %5 = arith.index_cast %4 : i32 to index
    %6 = memref.load %arg1[%5] : memref<16xf32, #tpu.memory_space<smem>>
    %c2_i32 = arith.constant 2 : i32
    %7 = arith.addi %0, %c2_i32 : i32
    %8 = arith.index_cast %7 : i32 to index
    %9 = memref.load %arg1[%8] : memref<16xf32, #tpu.memory_space<smem>>
    %c3_i32 = arith.constant 3 : i32
    %10 = arith.addi %0, %c3_i32 : i32
    %11 = arith.index_cast %10 : i32 to index
    %12 = memref.load %arg1[%11] : memref<16xf32, #tpu.memory_space<smem>>
    %c4_i32 = arith.constant 4 : i32
    %13 = arith.addi %0, %c4_i32 : i32
    %14 = arith.index_cast %13 : i32 to index
    %15 = memref.load %arg1[%14] : memref<16xf32, #tpu.memory_space<smem>>
    %c5_i32 = arith.constant 5 : i32
    %16 = arith.addi %0, %c5_i32 : i32
    %17 = arith.index_cast %16 : i32 to index
    %18 = memref.load %arg1[%17] : memref<16xf32, #tpu.memory_space<smem>>
    %c6_i32 = arith.constant 6 : i32
    %19 = arith.addi %0, %c6_i32 : i32
    %20 = arith.index_cast %19 : i32 to index
    %21 = memref.load %arg1[%20] : memref<16xf32, #tpu.memory_space<smem>>
    %c0 = arith.constant 0 : index
    %c0_0 = arith.constant 0 : index
    %c0_1 = arith.constant 0 : index
    %c0_2 = arith.constant 0 : index
    %22 = vector.load %arg2[%c0, %c0_0, %c0_1, %c0_2] : memref<1x3x8x128xf32, #tpu.memory_space<vmem>>, vector<1x3x8x128xf32>
    %23 = vector.shape_cast %22 : vector<1x3x8x128xf32> to vector<3x8x128xf32>
    %24 = vector.broadcast %6 : f32 to vector<3x8x128xf32>
    %25 = arith.mulf %23, %24 : vector<3x8x128xf32>
    %cst = arith.constant 0.000000e+00 : f32
    %cst_3 = arith.constant 1.000000e+00 : f32
    %26 = vector.broadcast %cst : f32 to vector<3x8x128xf32>
    %27 = arith.maximumf %26, %25 : vector<3x8x128xf32>
    %28 = vector.broadcast %cst_3 : f32 to vector<3x8x128xf32>
    %29 = arith.minimumf %28, %27 : vector<3x8x128xf32>
    %30 = vector.extract_strided_slice %29 {offsets = [0, 0, 0], sizes = [1, 8, 128], strides = [1, 1, 1]} : vector<3x8x128xf32> to vector<1x8x128xf32>
    %31 = vector.shape_cast %30 : vector<1x8x128xf32> to vector<8x128xf32>
    %32 = vector.extract_strided_slice %29 {offsets = [1, 0, 0], sizes = [1, 8, 128], strides = [1, 1, 1]} : vector<3x8x128xf32> to vector<1x8x128xf32>
    %33 = vector.shape_cast %32 : vector<1x8x128xf32> to vector<8x128xf32>
    %34 = vector.extract_strided_slice %29 {offsets = [2, 0, 0], sizes = [1, 8, 128], strides = [1, 1, 1]} : vector<3x8x128xf32> to vector<1x8x128xf32>
    %35 = vector.shape_cast %34 : vector<1x8x128xf32> to vector<8x128xf32>
    %cst_4 = arith.constant 2.990000e-01 : f32
    %36 = vector.broadcast %cst_4 : f32 to vector<8x128xf32>
    %37 = arith.mulf %36, %31 : vector<8x128xf32>
    %cst_5 = arith.constant 5.870000e-01 : f32
    %38 = vector.broadcast %cst_5 : f32 to vector<8x128xf32>
    %39 = arith.mulf %38, %33 : vector<8x128xf32>
    %40 = arith.addf %37, %39 : vector<8x128xf32>
    %cst_6 = arith.constant 1.140000e-01 : f32
    %41 = vector.broadcast %cst_6 : f32 to vector<8x128xf32>
    %42 = arith.mulf %41, %35 : vector<8x128xf32>
    %43 = arith.addf %40, %42 : vector<8x128xf32>
    %44 = vector.shape_cast %43 : vector<8x128xf32> to vector<1x8x128xf32>
    %cst_7 = arith.constant dense<0.000000e+00> : vector<1xf32>
    %45 = vector.multi_reduction <add>, %44, %cst_7 [1, 2] : vector<1x8x128xf32> to vector<1xf32>
    %46 = vector.shape_cast %45 : vector<1xf32> to vector<1x1x1xf32>
    %47 = vector.extract %46[0, 0, 0] : f32 from vector<1x1x1xf32>
    %cst_8 = arith.constant 3.906250e-03 : f32
    %48 = arith.mulf %47, %cst_8 : f32
    %cst_9 = arith.constant 1.000000e+00 : f32
    %49 = arith.subf %cst_9, %9 : f32
    %50 = arith.mulf %49, %48 : f32
    %51 = vector.broadcast %9 : f32 to vector<8x128xf32>
    %52 = arith.mulf %51, %31 : vector<8x128xf32>
    %53 = vector.broadcast %50 : f32 to vector<8x128xf32>
    %54 = arith.addf %52, %53 : vector<8x128xf32>
    %cst_10 = arith.constant 0.000000e+00 : f32
    %cst_11 = arith.constant 1.000000e+00 : f32
    %55 = vector.broadcast %cst_10 : f32 to vector<8x128xf32>
    %56 = arith.maximumf %55, %54 : vector<8x128xf32>
    %57 = vector.broadcast %cst_11 : f32 to vector<8x128xf32>
    %58 = arith.minimumf %57, %56 : vector<8x128xf32>
    %59 = vector.broadcast %9 : f32 to vector<8x128xf32>
    %60 = arith.mulf %59, %33 : vector<8x128xf32>
    %61 = vector.broadcast %50 : f32 to vector<8x128xf32>
    %62 = arith.addf %60, %61 : vector<8x128xf32>
    %cst_12 = arith.constant 0.000000e+00 : f32
    %cst_13 = arith.constant 1.000000e+00 : f32
    %63 = vector.broadcast %cst_12 : f32 to vector<8x128xf32>
    %64 = arith.maximumf %63, %62 : vector<8x128xf32>
    %65 = vector.broadcast %cst_13 : f32 to vector<8x128xf32>
    %66 = arith.minimumf %65, %64 : vector<8x128xf32>
    %67 = vector.broadcast %9 : f32 to vector<8x128xf32>
    %68 = arith.mulf %67, %35 : vector<8x128xf32>
    %69 = vector.broadcast %50 : f32 to vector<8x128xf32>
    %70 = arith.addf %68, %69 : vector<8x128xf32>
    %cst_14 = arith.constant 0.000000e+00 : f32
    %cst_15 = arith.constant 1.000000e+00 : f32
    %71 = vector.broadcast %cst_14 : f32 to vector<8x128xf32>
    %72 = arith.maximumf %71, %70 : vector<8x128xf32>
    %73 = vector.broadcast %cst_15 : f32 to vector<8x128xf32>
    %74 = arith.minimumf %73, %72 : vector<8x128xf32>
    %cst_16 = arith.constant 2.990000e-01 : f32
    %75 = vector.broadcast %cst_16 : f32 to vector<8x128xf32>
    %76 = arith.mulf %75, %58 : vector<8x128xf32>
    %cst_17 = arith.constant 5.870000e-01 : f32
    %77 = vector.broadcast %cst_17 : f32 to vector<8x128xf32>
    %78 = arith.mulf %77, %66 : vector<8x128xf32>
    %79 = arith.addf %76, %78 : vector<8x128xf32>
    %cst_18 = arith.constant 1.140000e-01 : f32
    %80 = vector.broadcast %cst_18 : f32 to vector<8x128xf32>
    %81 = arith.mulf %80, %74 : vector<8x128xf32>
    %82 = arith.addf %79, %81 : vector<8x128xf32>
    %cst_19 = arith.constant 1.000000e+00 : f32
    %83 = arith.subf %cst_19, %12 : f32
    %84 = vector.broadcast %12 : f32 to vector<8x128xf32>
    %85 = arith.mulf %84, %58 : vector<8x128xf32>
    %86 = vector.broadcast %83 : f32 to vector<8x128xf32>
    %87 = arith.mulf %86, %82 : vector<8x128xf32>
    %88 = arith.addf %85, %87 : vector<8x128xf32>
    %cst_20 = arith.constant 0.000000e+00 : f32
    %cst_21 = arith.constant 1.000000e+00 : f32
    %89 = vector.broadcast %cst_20 : f32 to vector<8x128xf32>
    %90 = arith.maximumf %89, %88 : vector<8x128xf32>
    %91 = vector.broadcast %cst_21 : f32 to vector<8x128xf32>
    %92 = arith.minimumf %91, %90 : vector<8x128xf32>
    %93 = vector.broadcast %12 : f32 to vector<8x128xf32>
    %94 = arith.mulf %93, %66 : vector<8x128xf32>
    %95 = vector.broadcast %83 : f32 to vector<8x128xf32>
    %96 = arith.mulf %95, %82 : vector<8x128xf32>
    %97 = arith.addf %94, %96 : vector<8x128xf32>
    %cst_22 = arith.constant 0.000000e+00 : f32
    %cst_23 = arith.constant 1.000000e+00 : f32
    %98 = vector.broadcast %cst_22 : f32 to vector<8x128xf32>
    %99 = arith.maximumf %98, %97 : vector<8x128xf32>
    %100 = vector.broadcast %cst_23 : f32 to vector<8x128xf32>
    %101 = arith.minimumf %100, %99 : vector<8x128xf32>
    %102 = vector.broadcast %12 : f32 to vector<8x128xf32>
    %103 = arith.mulf %102, %74 : vector<8x128xf32>
    %104 = vector.broadcast %83 : f32 to vector<8x128xf32>
    %105 = arith.mulf %104, %82 : vector<8x128xf32>
    %106 = arith.addf %103, %105 : vector<8x128xf32>
    %cst_24 = arith.constant 0.000000e+00 : f32
    %cst_25 = arith.constant 1.000000e+00 : f32
    %107 = vector.broadcast %cst_24 : f32 to vector<8x128xf32>
    %108 = arith.maximumf %107, %106 : vector<8x128xf32>
    %109 = vector.broadcast %cst_25 : f32 to vector<8x128xf32>
    %110 = arith.minimumf %109, %108 : vector<8x128xf32>
    %c0_26 = arith.constant 0 : index
    %c0_27 = arith.constant 0 : index
    %c0_28 = arith.constant 0 : index
    %c0_29 = arith.constant 0 : index
    %111 = vector.load %arg3[%c0_26, %c0_27, %c0_28, %c0_29] : memref<1x3x8x128xf32, #tpu.memory_space<vmem>>, vector<1x1x8x128xf32>
    %112 = vector.shape_cast %111 : vector<1x1x8x128xf32> to vector<8x128xf32>
    %113 = vector.shape_cast %92 : vector<8x128xf32> to vector<1x1x8x128xf32>
    tpu.vector_store %arg3[%c0_26, %c0_27, %c0_28, %c0_29], %113 {strides = array<i32>} : memref<1x3x8x128xf32, #tpu.memory_space<vmem>>, vector<1x1x8x128xf32>,
    %c0_30 = arith.constant 0 : index
    %c1 = arith.constant 1 : index
    %c0_31 = arith.constant 0 : index
    %c0_32 = arith.constant 0 : index
    %114 = vector.load %arg3[%c0_30, %c1, %c0_31, %c0_32] : memref<1x3x8x128xf32, #tpu.memory_space<vmem>>, vector<1x1x8x128xf32>
    %115 = vector.shape_cast %114 : vector<1x1x8x128xf32> to vector<8x128xf32>
    %116 = vector.shape_cast %101 : vector<8x128xf32> to vector<1x1x8x128xf32>
    tpu.vector_store %arg3[%c0_30, %c1, %c0_31, %c0_32], %116 {strides = array<i32>} : memref<1x3x8x128xf32, #tpu.memory_space<vmem>>, vector<1x1x8x128xf32>,
    %c0_33 = arith.constant 0 : index
    %c2 = arith.constant 2 : index
    %c0_34 = arith.constant 0 : index
    %c0_35 = arith.constant 0 : index
    %117 = vector.load %arg3[%c0_33, %c2, %c0_34, %c0_35] : memref<1x3x8x128xf32, #tpu.memory_space<vmem>>, vector<1x1x8x128xf32>
    %118 = vector.shape_cast %117 : vector<1x1x8x128xf32> to vector<8x128xf32>
    %119 = vector.shape_cast %110 : vector<8x128xf32> to vector<1x1x8x128xf32>
    tpu.vector_store %arg3[%c0_33, %c2, %c0_34, %c0_35], %119 {strides = array<i32>} : memref<1x3x8x128xf32, #tpu.memory_space<vmem>>, vector<1x1x8x128xf32>,
    %cst_36 = arith.constant 5.000000e-01 : f32
    %120 = arith.cmpf ogt, %3, %cst_36 : f32
    %121 = arith.extui %120 : i1 to i32
    %c0_i32_37 = arith.constant 0 : i32
    %122 = arith.cmpi ne, %121, %c0_i32_37 : i32
    scf.if %122 {
      %c0_71 = arith.constant 0 : index
      %c0_72 = arith.constant 0 : index
      %c0_73 = arith.constant 0 : index
      %c0_74 = arith.constant 0 : index
      %183 = vector.load %arg3[%c0_71, %c0_72, %c0_73, %c0_74] : memref<1x3x8x128xf32, #tpu.memory_space<vmem>>, vector<1x3x8x128xf32>
      %184 = vector.shape_cast %183 : vector<1x3x8x128xf32> to vector<3x8x128xf32>
      %185 = vector.extract_strided_slice %184 {offsets = [0, 0, 0], sizes = [1, 8, 128], strides = [1, 1, 1]} : vector<3x8x128xf32> to vector<1x8x128xf32>
      %186 = vector.shape_cast %185 : vector<1x8x128xf32> to vector<8x128xf32>
      %187 = vector.extract_strided_slice %184 {offsets = [1, 0, 0], sizes = [1, 8, 128], strides = [1, 1, 1]} : vector<3x8x128xf32> to vector<1x8x128xf32>
      %188 = vector.shape_cast %187 : vector<1x8x128xf32> to vector<8x128xf32>
      %189 = vector.extract_strided_slice %184 {offsets = [2, 0, 0], sizes = [1, 8, 128], strides = [1, 1, 1]} : vector<3x8x128xf32> to vector<1x8x128xf32>
      %190 = vector.shape_cast %189 : vector<1x8x128xf32> to vector<8x128xf32>
      %191 = arith.maximumf %186, %188 : vector<8x128xf32>
      %192 = arith.maximumf %191, %190 : vector<8x128xf32>
      %193 = arith.minimumf %186, %188 : vector<8x128xf32>
      %194 = arith.minimumf %193, %190 : vector<8x128xf32>
      %195 = arith.subf %192, %194 : vector<8x128xf32>
      %cst_75 = arith.constant 0.000000e+00 : f32
      %196 = vector.broadcast %cst_75 : f32 to vector<8x128xf32>
      %197 = arith.cmpf oeq, %192, %196 : vector<8x128xf32>
      %cst_76 = arith.constant 1.000000e+00 : f32
      %198 = vector.broadcast %cst_76 : f32 to vector<8x128xf32>
      %199 = arith.select %197, %198, %192 : vector<8x128xi1>, vector<8x128xf32>
      %200 = arith.divf %195, %199 : vector<8x128xf32>
      %cst_77 = arith.constant 0.000000e+00 : f32
      %201 = vector.broadcast %cst_77 : f32 to vector<8x128xf32>
      %202 = arith.cmpf oeq, %195, %201 : vector<8x128xf32>
      %cst_78 = arith.constant 1.000000e+00 : f32
      %203 = vector.broadcast %cst_78 : f32 to vector<8x128xf32>
      %204 = arith.select %202, %203, %195 : vector<8x128xi1>, vector<8x128xf32>
      %cst_79 = arith.constant 1.000000e+00 : f32
      %205 = vector.broadcast %cst_79 : f32 to vector<8x128xf32>
      %206 = arith.divf %205, %204 : vector<8x128xf32>
      %207 = arith.subf %192, %186 : vector<8x128xf32>
      %208 = arith.mulf %207, %206 : vector<8x128xf32>
      %209 = arith.subf %192, %188 : vector<8x128xf32>
      %210 = arith.mulf %209, %206 : vector<8x128xf32>
      %211 = arith.subf %192, %190 : vector<8x128xf32>
      %212 = arith.mulf %211, %206 : vector<8x128xf32>
      %213 = arith.cmpf oeq, %192, %186 : vector<8x128xf32>
      %214 = arith.subf %212, %210 : vector<8x128xf32>
      %215 = arith.cmpf oeq, %192, %188 : vector<8x128xf32>
      %cst_80 = arith.constant 2.000000e+00 : f32
      %216 = vector.broadcast %cst_80 : f32 to vector<8x128xf32>
      %217 = arith.addf %216, %208 : vector<8x128xf32>
      %218 = arith.subf %217, %212 : vector<8x128xf32>
      %cst_81 = arith.constant 4.000000e+00 : f32
      %219 = vector.broadcast %cst_81 : f32 to vector<8x128xf32>
      %220 = arith.addf %219, %210 : vector<8x128xf32>
      %221 = arith.subf %220, %208 : vector<8x128xf32>
      %222 = arith.select %215, %218, %221 : vector<8x128xi1>, vector<8x128xf32>
      %223 = arith.select %213, %214, %222 : vector<8x128xi1>, vector<8x128xf32>
      %cst_82 = arith.constant 6.000000e+00 : f32
      %224 = arith.mulf %cst_82, %15 : f32
      %cst_83 = arith.constant 6.000000e+00 : f32
      %225 = arith.addf %224, %cst_83 : f32
      %226 = vector.broadcast %225 : f32 to vector<8x128xf32>
      %227 = arith.addf %223, %226 : vector<8x128xf32>
      %228 = arith.mulf %192, %200 : vector<8x128xf32>
      %cst_84 = arith.constant 5.000000e+00 : f32
      %229 = vector.broadcast %cst_84 : f32 to vector<8x128xf32>
      %230 = arith.addf %229, %227 : vector<8x128xf32>
      %cst_85 = arith.constant 0.166666672 : f32
      %231 = vector.broadcast %cst_85 : f32 to vector<8x128xf32>
      %232 = arith.mulf %230, %231 : vector<8x128xf32>
      %233 = math.floor %232 : vector<8x128xf32>
      %cst_86 = arith.constant 6.000000e+00 : f32
      %234 = vector.broadcast %cst_86 : f32 to vector<8x128xf32>
      %235 = arith.mulf %234, %233 : vector<8x128xf32>
      %236 = arith.subf %230, %235 : vector<8x128xf32>
      %cst_87 = arith.constant 4.000000e+00 : f32
      %237 = vector.broadcast %cst_87 : f32 to vector<8x128xf32>
      %238 = arith.subf %237, %236 : vector<8x128xf32>
      %239 = arith.minimumf %236, %238 : vector<8x128xf32>
      %cst_88 = arith.constant 0.000000e+00 : f32
      %cst_89 = arith.constant 1.000000e+00 : f32
      %240 = vector.broadcast %cst_88 : f32 to vector<8x128xf32>
      %241 = arith.maximumf %240, %239 : vector<8x128xf32>
      %242 = vector.broadcast %cst_89 : f32 to vector<8x128xf32>
      %243 = arith.minimumf %242, %241 : vector<8x128xf32>
      %244 = arith.mulf %228, %243 : vector<8x128xf32>
      %245 = arith.subf %192, %244 : vector<8x128xf32>
      %c0_90 = arith.constant 0 : index
      %c0_91 = arith.constant 0 : index
      %c0_92 = arith.constant 0 : index
      %c0_93 = arith.constant 0 : index
      %246 = vector.load %arg3[%c0_90, %c0_91, %c0_92, %c0_93] : memref<1x3x8x128xf32, #tpu.memory_space<vmem>>, vector<1x1x8x128xf32>
      %247 = vector.shape_cast %246 : vector<1x1x8x128xf32> to vector<8x128xf32>
      %248 = vector.shape_cast %245 : vector<8x128xf32> to vector<1x1x8x128xf32>
      tpu.vector_store %arg3[%c0_90, %c0_91, %c0_92, %c0_93], %248 {strides = array<i32>} : memref<1x3x8x128xf32, #tpu.memory_space<vmem>>, vector<1x1x8x128xf32>,
      %cst_94 = arith.constant 3.000000e+00 : f32
      %249 = vector.broadcast %cst_94 : f32 to vector<8x128xf32>
      %250 = arith.addf %249, %227 : vector<8x128xf32>
      %cst_95 = arith.constant 0.166666672 : f32
      %251 = vector.broadcast %cst_95 : f32 to vector<8x128xf32>
      %252 = arith.mulf %250, %251 : vector<8x128xf32>
      %253 = math.floor %252 : vector<8x128xf32>
      %cst_96 = arith.constant 6.000000e+00 : f32
      %254 = vector.broadcast %cst_96 : f32 to vector<8x128xf32>
      %255 = arith.mulf %254, %253 : vector<8x128xf32>
      %256 = arith.subf %250, %255 : vector<8x128xf32>
      %cst_97 = arith.constant 4.000000e+00 : f32
      %257 = vector.broadcast %cst_97 : f32 to vector<8x128xf32>
      %258 = arith.subf %257, %256 : vector<8x128xf32>
      %259 = arith.minimumf %256, %258 : vector<8x128xf32>
      %cst_98 = arith.constant 0.000000e+00 : f32
      %cst_99 = arith.constant 1.000000e+00 : f32
      %260 = vector.broadcast %cst_98 : f32 to vector<8x128xf32>
      %261 = arith.maximumf %260, %259 : vector<8x128xf32>
      %262 = vector.broadcast %cst_99 : f32 to vector<8x128xf32>
      %263 = arith.minimumf %262, %261 : vector<8x128xf32>
      %264 = arith.mulf %228, %263 : vector<8x128xf32>
      %265 = arith.subf %192, %264 : vector<8x128xf32>
      %c0_100 = arith.constant 0 : index
      %c1_101 = arith.constant 1 : index
      %c0_102 = arith.constant 0 : index
      %c0_103 = arith.constant 0 : index
      %266 = vector.load %arg3[%c0_100, %c1_101, %c0_102, %c0_103] : memref<1x3x8x128xf32, #tpu.memory_space<vmem>>, vector<1x1x8x128xf32>
      %267 = vector.shape_cast %266 : vector<1x1x8x128xf32> to vector<8x128xf32>
      %268 = vector.shape_cast %265 : vector<8x128xf32> to vector<1x1x8x128xf32>
      tpu.vector_store %arg3[%c0_100, %c1_101, %c0_102, %c0_103], %268 {strides = array<i32>} : memref<1x3x8x128xf32, #tpu.memory_space<vmem>>, vector<1x1x8x128xf32>,
      %cst_104 = arith.constant 1.000000e+00 : f32
      %269 = vector.broadcast %cst_104 : f32 to vector<8x128xf32>
      %270 = arith.addf %269, %227 : vector<8x128xf32>
      %cst_105 = arith.constant 0.166666672 : f32
      %271 = vector.broadcast %cst_105 : f32 to vector<8x128xf32>
      %272 = arith.mulf %270, %271 : vector<8x128xf32>
      %273 = math.floor %272 : vector<8x128xf32>
      %cst_106 = arith.constant 6.000000e+00 : f32
      %274 = vector.broadcast %cst_106 : f32 to vector<8x128xf32>
      %275 = arith.mulf %274, %273 : vector<8x128xf32>
      %276 = arith.subf %270, %275 : vector<8x128xf32>
      %cst_107 = arith.constant 4.000000e+00 : f32
      %277 = vector.broadcast %cst_107 : f32 to vector<8x128xf32>
      %278 = arith.subf %277, %276 : vector<8x128xf32>
      %279 = arith.minimumf %276, %278 : vector<8x128xf32>
      %cst_108 = arith.constant 0.000000e+00 : f32
      %cst_109 = arith.constant 1.000000e+00 : f32
      %280 = vector.broadcast %cst_108 : f32 to vector<8x128xf32>
      %281 = arith.maximumf %280, %279 : vector<8x128xf32>
      %282 = vector.broadcast %cst_109 : f32 to vector<8x128xf32>
      %283 = arith.minimumf %282, %281 : vector<8x128xf32>
      %284 = arith.mulf %228, %283 : vector<8x128xf32>
      %285 = arith.subf %192, %284 : vector<8x128xf32>
      %c0_110 = arith.constant 0 : index
      %c2_111 = arith.constant 2 : index
      %c0_112 = arith.constant 0 : index
      %c0_113 = arith.constant 0 : index
      %286 = vector.load %arg3[%c0_110, %c2_111, %c0_112, %c0_113] : memref<1x3x8x128xf32, #tpu.memory_space<vmem>>, vector<1x1x8x128xf32>
      %287 = vector.shape_cast %286 : vector<1x1x8x128xf32> to vector<8x128xf32>
      %288 = vector.shape_cast %285 : vector<8x128xf32> to vector<1x1x8x128xf32>
      tpu.vector_store %arg3[%c0_110, %c2_111, %c0_112, %c0_113], %288 {strides = array<i32>} : memref<1x3x8x128xf32, #tpu.memory_space<vmem>>, vector<1x1x8x128xf32>,
    } else {
    }
    %c0_38 = arith.constant 0 : index
    %c0_39 = arith.constant 0 : index
    %c0_40 = arith.constant 0 : index
    %c0_41 = arith.constant 0 : index
    %123 = vector.load %arg3[%c0_38, %c0_39, %c0_40, %c0_41] : memref<1x3x8x128xf32, #tpu.memory_space<vmem>>, vector<1x3x8x128xf32>
    %124 = vector.shape_cast %123 : vector<1x3x8x128xf32> to vector<3x8x128xf32>
    %125 = vector.extract_strided_slice %124 {offsets = [0, 0, 0], sizes = [1, 8, 128], strides = [1, 1, 1]} : vector<3x8x128xf32> to vector<1x8x128xf32>
    %126 = vector.shape_cast %125 : vector<1x8x128xf32> to vector<8x128xf32>
    %127 = vector.extract_strided_slice %124 {offsets = [1, 0, 0], sizes = [1, 8, 128], strides = [1, 1, 1]} : vector<3x8x128xf32> to vector<1x8x128xf32>
    %128 = vector.shape_cast %127 : vector<1x8x128xf32> to vector<8x128xf32>
    %129 = vector.extract_strided_slice %124 {offsets = [2, 0, 0], sizes = [1, 8, 128], strides = [1, 1, 1]} : vector<3x8x128xf32> to vector<1x8x128xf32>
    %130 = vector.shape_cast %129 : vector<1x8x128xf32> to vector<8x128xf32>
    %cst_42 = arith.constant 5.000000e-01 : f32
    %131 = arith.cmpf ogt, %18, %cst_42 : f32
    %cst_43 = arith.constant 2.990000e-01 : f32
    %132 = vector.broadcast %cst_43 : f32 to vector<8x128xf32>
    %133 = arith.mulf %132, %126 : vector<8x128xf32>
    %cst_44 = arith.constant 5.870000e-01 : f32
    %134 = vector.broadcast %cst_44 : f32 to vector<8x128xf32>
    %135 = arith.mulf %134, %128 : vector<8x128xf32>
    %136 = arith.addf %133, %135 : vector<8x128xf32>
    %cst_45 = arith.constant 1.140000e-01 : f32
    %137 = vector.broadcast %cst_45 : f32 to vector<8x128xf32>
    %138 = arith.mulf %137, %130 : vector<8x128xf32>
    %139 = arith.addf %136, %138 : vector<8x128xf32>
    %140 = arith.select %131, %139, %126 : vector<8x128xf32>
    %141 = arith.select %131, %139, %128 : vector<8x128xf32>
    %142 = arith.select %131, %139, %130 : vector<8x128xf32>
    %cst_46 = arith.constant 5.000000e-01 : f32
    %143 = arith.cmpf ogt, %21, %cst_46 : f32
    %cst_47 = arith.constant 5.000000e-01 : f32
    %144 = vector.broadcast %cst_47 : f32 to vector<8x128xf32>
    %145 = arith.cmpf olt, %140, %144 : vector<8x128xf32>
    %cst_48 = arith.constant 1.000000e+00 : f32
    %146 = vector.broadcast %cst_48 : f32 to vector<8x128xf32>
    %147 = arith.subf %146, %140 : vector<8x128xf32>
    %148 = arith.select %145, %140, %147 : vector<8x128xi1>, vector<8x128xf32>
    %149 = arith.select %143, %148, %140 : vector<8x128xf32>
    %cst_49 = arith.constant 5.000000e-01 : f32
    %150 = vector.broadcast %cst_49 : f32 to vector<8x128xf32>
    %151 = arith.cmpf olt, %141, %150 : vector<8x128xf32>
    %cst_50 = arith.constant 1.000000e+00 : f32
    %152 = vector.broadcast %cst_50 : f32 to vector<8x128xf32>
    %153 = arith.subf %152, %141 : vector<8x128xf32>
    %154 = arith.select %151, %141, %153 : vector<8x128xi1>, vector<8x128xf32>
    %155 = arith.select %143, %154, %141 : vector<8x128xf32>
    %cst_51 = arith.constant 5.000000e-01 : f32
    %156 = vector.broadcast %cst_51 : f32 to vector<8x128xf32>
    %157 = arith.cmpf olt, %142, %156 : vector<8x128xf32>
    %cst_52 = arith.constant 1.000000e+00 : f32
    %158 = vector.broadcast %cst_52 : f32 to vector<8x128xf32>
    %159 = arith.subf %158, %142 : vector<8x128xf32>
    %160 = arith.select %157, %142, %159 : vector<8x128xi1>, vector<8x128xf32>
    %161 = arith.select %143, %160, %142 : vector<8x128xf32>
    %cst_53 = arith.constant 4.850000e-01 : f32
    %162 = vector.broadcast %cst_53 : f32 to vector<8x128xf32>
    %163 = arith.subf %149, %162 : vector<8x128xf32>
    %cst_54 = arith.constant 4.36681223 : f32
    %164 = vector.broadcast %cst_54 : f32 to vector<8x128xf32>
    %165 = arith.mulf %163, %164 : vector<8x128xf32>
    %c0_55 = arith.constant 0 : index
    %c0_56 = arith.constant 0 : index
    %c0_57 = arith.constant 0 : index
    %c0_58 = arith.constant 0 : index
    %166 = vector.load %arg3[%c0_55, %c0_56, %c0_57, %c0_58] : memref<1x3x8x128xf32, #tpu.memory_space<vmem>>, vector<1x1x8x128xf32>
    %167 = vector.shape_cast %166 : vector<1x1x8x128xf32> to vector<8x128xf32>
    %168 = vector.shape_cast %165 : vector<8x128xf32> to vector<1x1x8x128xf32>
    tpu.vector_store %arg3[%c0_55, %c0_56, %c0_57, %c0_58], %168 {strides = array<i32>} : memref<1x3x8x128xf32, #tpu.memory_space<vmem>>, vector<1x1x8x128xf32>,
    %cst_59 = arith.constant 4.560000e-01 : f32
    %169 = vector.broadcast %cst_59 : f32 to vector<8x128xf32>
    %170 = arith.subf %155, %169 : vector<8x128xf32>
    %cst_60 = arith.constant 4.46428585 : f32
    %171 = vector.broadcast %cst_60 : f32 to vector<8x128xf32>
    %172 = arith.mulf %170, %171 : vector<8x128xf32>
    %c0_61 = arith.constant 0 : index
    %c1_62 = arith.constant 1 : index
    %c0_63 = arith.constant 0 : index
    %c0_64 = arith.constant 0 : index
    %173 = vector.load %arg3[%c0_61, %c1_62, %c0_63, %c0_64] : memref<1x3x8x128xf32, #tpu.memory_space<vmem>>, vector<1x1x8x128xf32>
    %174 = vector.shape_cast %173 : vector<1x1x8x128xf32> to vector<8x128xf32>
    %175 = vector.shape_cast %172 : vector<8x128xf32> to vector<1x1x8x128xf32>
    tpu.vector_store %arg3[%c0_61, %c1_62, %c0_63, %c0_64], %175 {strides = array<i32>} : memref<1x3x8x128xf32, #tpu.memory_space<vmem>>, vector<1x1x8x128xf32>,
    %cst_65 = arith.constant 4.060000e-01 : f32
    %176 = vector.broadcast %cst_65 : f32 to vector<8x128xf32>
    %177 = arith.subf %161, %176 : vector<8x128xf32>
    %cst_66 = arith.constant 4.44444466 : f32
    %178 = vector.broadcast %cst_66 : f32 to vector<8x128xf32>
    %179 = arith.mulf %177, %178 : vector<8x128xf32>
    %c0_67 = arith.constant 0 : index
    %c2_68 = arith.constant 2 : index
    %c0_69 = arith.constant 0 : index
    %c0_70 = arith.constant 0 : index
    %180 = vector.load %arg3[%c0_67, %c2_68, %c0_69, %c0_70] : memref<1x3x8x128xf32, #tpu.memory_space<vmem>>, vector<1x1x8x128xf32>
    %181 = vector.shape_cast %180 : vector<1x1x8x128xf32> to vector<8x128xf32>
    %182 = vector.shape_cast %179 : vector<8x128xf32> to vector<1x1x8x128xf32>
    tpu.vector_store %arg3[%c0_67, %c2_68, %c0_69, %c0_70], %182 {strides = array<i32>} : memref<1x3x8x128xf32, #tpu.memory_space<vmem>>, vector<1x1x8x128xf32>,
    return
  }
  func.func @transform_0(%arg0: i32, %arg1: memref<16xf32, #tpu.memory_space<smem>>) -> (i32, i32, i32, i32) {
    %c0_i32 = arith.constant 0 : i32
    %c0_i32_0 = arith.constant 0 : i32
    %c0_i32_1 = arith.constant 0 : i32
    %c0_i32_2 = arith.constant 0 : i32
    return %arg0, %c0_i32, %c0_i32_0, %c0_i32_1 : i32, i32, i32, i32
  }
  func.func @transform_1(%arg0: i32, %arg1: memref<16xf32, #tpu.memory_space<smem>>) -> (i32, i32, i32, i32) {
    %c0_i32 = arith.constant 0 : i32
    %c0_i32_0 = arith.constant 0 : i32
    %c0_i32_1 = arith.constant 0 : i32
    %c0_i32_2 = arith.constant 0 : i32
    return %arg0, %c0_i32, %c0_i32_0, %c0_i32_1 : i32, i32, i32, i32
  }
}

</mosaic_0001>

<llo_original>
// kernel: tpu_custom_call.1
$region0: #{tpu_custom_call.1}
  #allocation0 [shape = 'u32[]', space=smem, size = 0x4, offset = 0x4, fixed_abs, tag = 'smem constant byte address 0x4 - core index']
  #allocation1 [shape = 'u32[144,128]{1,0:T(1,128)}', space=vmem, size = 0x12000, scoped, tag = 'internal scratch']
  #allocation2 [shape = 's32[1]{0}', space=sflag, size = 0x4, scoped, tag = 'scoped memory for tpu_custom_call.1']
  #allocation3 [shape = 'u8[512]{0}', space=smem, size = 0x200, scoped, tag = 'prefetched SMEM operand 0']
  %s0 = inlined_call_operand.hbm [shape: f32[16], index: 0, kind: input, shape index: {}]
  %s1 = inlined_call_operand.hbm [shape: f32[2,3,8,128], index: 1, kind: input, shape index: {}]
  %s2 = inlined_call_operand.hbm [shape: f32[2,3,8,128], index: 2, kind: output, shape index: {}]
  %s3 = sld [smem:[#allocation0]]
  $region45: #{tpu_custom_call.1} parent=0
    _
  %s5 = ssub.s32 1, %s3
  %s6 = scalar_select 0, %s5, %s3
  %8 = dma.hbm_to_smem %s0, 16, [#allocation3], [#allocation2]
  %9 = dma.done [#allocation2], 16
  %10 = sfence
  $region1: #{tpu_custom_call.1} parent=0
    #allocation4 [shape = 'u8[24576]{0}', space=vmem, size = 0x6000, scoped, tag = 'input window, operand 1']
    #allocation5 [shape = 's32[2]{0}', space=sflag, size = 0x8, scoped, tag = 'scoped memory for tpu_custom_call.1']
    #allocation6 [shape = 's32[2]{0}', space=sflag, size = 0x8, scoped, tag = 'scoped memory for tpu_custom_call.1']
    #allocation7 [shape = 'u8[24576]{0}', space=vmem, size = 0x6000, scoped, tag = 'output window, operand 0']
    %11 = vsyncpa [#allocation5], 0
    %s12 = scalar_lea.sflag [#allocation5], 1
    %13 = vsyncpa %s12, 0
    %14 = vsyncpa [#allocation6], 0
    %s15 = scalar_lea.sflag [#allocation6], 1
    %16 = vsyncpa %s15, 0
    loop: start=0, step=1, limit=4
    $region2: #{tpu_custom_call.1} parent=1 // loop_pre_header
      _
    $region3: #{tpu_custom_call.1} parent=1 // loop_header
      %s18 = sphi 0, %s22
      %p19 = scmp.ge.s32.totalorder %s18, 4
      %s28 = sphi 0, %s30
      %s31 = sphi 0, %s28
      %s32 = sphi 0, %s31
      %s48 = sphi 0, %s32
      %s54 = sphi 0, %s56
      %s57 = sphi 0, %s54
      %s58 = sphi 0, %s57
      %s74 = sphi 0, %s58
    $region4: #{tpu_custom_call.1} parent=1 // loop_header_branch
      %21 = sbr.rel (%p19) target = $region8
    $region5: #{tpu_custom_call.1} parent=1 // loop_body
      %s23 = ssub.s32 %s18, 1
      %s24 = ssub.s32 %s18, 2
      %s25 = sadd.s32 %s18, 1
      %s26 = ssub.s32 %s18, %s25
      %p27 = scmp.eq.s32.totalorder %s26, 0
      %s29 = sadd.s32 %s28, 1
      %s30 = scalar_select %p27, %s28, %s29
      %p33 = pneg %p27
      %p34 = scmp.eq.s32.totalorder %s18, 1
      %p35 = por %p33, %p34
      %p36 = scmp.ne.s32.totalorder %s28, %s31
      %p37 = scmp.eq.s32.totalorder %s18, 0
      %p38 = por %p36, %p37
      %p39 = scmp.ne.s32.totalorder %s28, %s31
      %p40 = scmp.eq.s32.totalorder %s23, 1
      %p41 = por %p39, %p40
      %p42 = scmp.ne.s32.totalorder %s31, %s32
      %p43 = scmp.eq.s32.totalorder %s23, 0
      %p44 = por %p42, %p43
      %p45 = scmp.ne.s32.totalorder %s31, %s32
      %p46 = scmp.eq.s32.totalorder %s24, 1
      %p47 = por %p45, %p46
      %p49 = scmp.ne.s32.totalorder %s32, %s48
      %p50 = scmp.eq.s32.totalorder %s24, 0
      %p51 = por %p49, %p50
      %s52 = ssub.s32 %s18, %s25
      %p53 = scmp.eq.s32.totalorder %s52, 0
      %s55 = sadd.s32 %s54, 1
      %s56 = scalar_select %p53, %s54, %s55
      %p59 = pneg %p53
      %p60 = scmp.eq.s32.totalorder %s18, 1
      %p61 = por %p59, %p60
      %p62 = scmp.ne.s32.totalorder %s54, %s57
      %p63 = scmp.eq.s32.totalorder %s18, 0
      %p64 = por %p62, %p63
      %p65 = scmp.ne.s32.totalorder %s54, %s57
      %p66 = scmp.eq.s32.totalorder %s23, 1
      %p67 = por %p65, %p66
      %p68 = scmp.ne.s32.totalorder %s57, %s58
      %p69 = scmp.eq.s32.totalorder %s23, 0
      %p70 = por %p68, %p69
      %p71 = scmp.ne.s32.totalorder %s57, %s58
      %p72 = scmp.eq.s32.totalorder %s24, 1
      %p73 = por %p71, %p72
      %p75 = scmp.ne.s32.totalorder %s58, %s74
      %p76 = scmp.eq.s32.totalorder %s24, 0
      %p77 = por %p75, %p76
      %p78 = scmp.le.s32.totalorder 1, %s18
      %p79 = scmp.lt.s32.totalorder %s18, 3
      %p80 = pnand %p78, %p79
      %p81 = pneg %p80
      // Predicated region
      $region9: #{tpu_custom_call.1} parent=5 // pred_check
        _
      $region10: #{tpu_custom_call.1} parent=5 // pred_check_branch
        %83 = sbr.rel (%p80) target = $region12
      $region11: #{tpu_custom_call.1} parent=5 // pred_region
        %s84 = ssub.s32 %s18, 1
      $region12: #{tpu_custom_call.1} parent=5 // pred_fallthru
        _
      %p85 = scmp.lt.s32.totalorder %s18, 2
      // Predicated region
      $region13: #{tpu_custom_call.1} parent=5 // pred_check
        %p86 = pneg %p85
      $region14: #{tpu_custom_call.1} parent=5 // pred_check_branch
        %88 = sbr.rel (%p86) target = $region16
      $region15: #{tpu_custom_call.1} parent=5 // pred_region
        // Predicated region
        $region17: #{tpu_custom_call.1} parent=15 // pred_check
          %p89 = pneg %p38
        $region18: #{tpu_custom_call.1} parent=15 // pred_check_branch
          %91 = sbr.rel (%p89) target = $region20
        $region19: #{tpu_custom_call.1} parent=15 // pred_region
          %s92 = sand.u32 %s28, 1
          %s93 = scalar_lea.sflag [#allocation5], %s92
          %s94 = sand.u32 %s28, 1
          %s95 = smul.addr %s94, 24
          %s96 = scalar_lea.vmem [#allocation4], %s95
          %s98 = ssub.s32 384, 384
          %99 = vsyncadd %s93, %s98
          %s100 = smul.addr %s18, 3
          %s101 = smul.addr %s100, 128
          %s102 = scalar_lea.hbm %s1, %s101
          %s103 = sshll.u32 %s96, 4
          %s104 = int_to_ptr.vmem [resolvable:$true] %s103
          %109 = dma.hbm_to_vmem [thread:$0]  %s102, 384, %s104, %s93, 128, 128, 8
        $region20: #{tpu_custom_call.1} parent=15 // pred_fallthru
          _
      $region16: #{tpu_custom_call.1} parent=5 // pred_fallthru
        _
      %p110 = scmp.le.s32.totalorder 1, %s18
      %p111 = scmp.lt.s32.totalorder %s18, 3
      %p112 = pnand %p110, %p111
      %p113 = pneg %p112
      // Predicated region
      $region21: #{tpu_custom_call.1} parent=5 // pred_check
        _
      $region22: #{tpu_custom_call.1} parent=5 // pred_check_branch
        %115 = sbr.rel (%p112) target = $region24
      $region23: #{tpu_custom_call.1} parent=5 // pred_region
        %s116 = ssub.s32 %s18, 1
        %s117 = sand.u32 %s31, 1
        %s118 = scalar_lea.sflag [#allocation5], %s117
        %s119 = sand.u32 %s31, 1
        %s120 = smul.addr %s119, 24
        %s121 = scalar_lea.vmem [#allocation4], %s120
        // Predicated region
        $region25: #{tpu_custom_call.1} parent=23 // pred_check
          %p122 = pneg %p44
        $region26: #{tpu_custom_call.1} parent=23 // pred_check_branch
          %124 = sbr.rel (%p122) target = $region28
        $region27: #{tpu_custom_call.1} parent=23 // pred_region
          %125 = dma.done %s118, 384
        $region28: #{tpu_custom_call.1} parent=23 // pred_fallthru
          _
        %s126 = sand.u32 %s31, 1
        %s127 = scalar_lea.sflag [#allocation5], %s126
        %s128 = sand.u32 %s31, 1
        %s129 = smul.addr %s128, 24
        %s130 = scalar_lea.vmem [#allocation4], %s129
        %p131 = pneg %p44
        %p132 = pneg %p41
        %p133 = pneg %p70
        %p134 = pneg %p67
        %s135 = sand.u32 %s57, 1
        %s136 = scalar_lea.sflag [#allocation6], %s135
        %s137 = sand.u32 %s57, 1
        %s138 = smul.addr %s137, 24
        %s139 = scalar_lea.vmem [#allocation7], %s138
        %s140 = smul.u32 %s23, 8
        %s141 = sld [smem:[#allocation3 + %s140]]
        %s142 = sadd.s32 %s140, 1
        %s143 = sld [smem:[#allocation3 + %s142]]
        %s144 = sadd.s32 %s140, 2
        %s145 = sld [smem:[#allocation3 + %s144]]
        %s146 = sadd.s32 %s140, 3
        %s147 = sld [smem:[#allocation3 + %s146]]
        %s148 = sadd.s32 %s140, 4
        %s149 = sld [smem:[#allocation3 + %s148]]
        %s150 = sadd.s32 %s140, 5
        %s151 = sld [smem:[#allocation3 + %s150]]
        %s152 = sadd.s32 %s140, 6
        %s153 = sld [smem:[#allocation3 + %s152]]
        %v154 = vld [vmem:[%s121] sm:$0xff]
        %v155 = vld [vmem:[%s121 + $0x8] sm:$0xff]
        %v156 = vld [vmem:[%s121 + $0x10] sm:$0xff]
        %v157 = vstv %s143
        %v158 = vmul.f32 %v154, %v157
        %v159 = vmul.f32 %v155, %v157
        %v160 = vmul.f32 %v156, %v157
        %v161 = vmax.f32 %v158, 0.0
        %v162 = vmax.f32 %v159, 0.0
        %v163 = vmax.f32 %v160, 0.0
        %v164 = vmin.f32 %v161, 1.0
        %v165 = vmin.f32 %v162, 1.0
        %v166 = vmin.f32 %v163, 1.0
        %v167 = vmul.f32 %v164, 0.299
        %v168 = vmul.f32 %v165, 0.587
        %v169 = vadd.f32 %v167, %v168
        %v170 = vmul.f32 %v166, 0.114
        %v171 = vadd.f32 %v169, %v170
        %172 = vadd.xlane.f32.xlu0 %v171
        %v173 = vpop.xlane.xlu0 %172
        %v174 = vrot.slane %v173, 4
        %v175 = vadd.f32 %v173, %v174
        %v176 = vrot.slane %v175, 2
        %v177 = vadd.f32 %v175, %v176
        %v178 = vrot.slane %v177, 1
        %v179 = vadd.f32 %v177, %v178
        %s180 = vtos %v179
        %s181 = smul.f32 %s180, 0.00390625
        %s182 = ssub.f32 1.0, %s145
        %s183 = smul.f32 %s182, %s181
        %v184 = vstv %s145
        %v185 = vmul.f32 %v184, %v164
        %v186 = vstv %s183
        %v187 = vadd.f32 %v185, %v186
        %v188 = vmax.f32 %v187, 0.0
        %v189 = vmin.f32 %v188, 1.0
        %v190 = vmul.f32 %v184, %v165
        %v191 = vadd.f32 %v190, %v186
        %v192 = vmax.f32 %v191, 0.0
        %v193 = vmin.f32 %v192, 1.0
        %v194 = vmul.f32 %v184, %v166
        %v195 = vadd.f32 %v194, %v186
        %v196 = vmax.f32 %v195, 0.0
        %v197 = vmin.f32 %v196, 1.0
        %v198 = vmul.f32 %v189, 0.299
        %v199 = vmul.f32 %v193, 0.587
        %v200 = vadd.f32 %v198, %v199
        %v201 = vmul.f32 %v197, 0.114
        %v202 = vadd.f32 %v200, %v201
        %s203 = ssub.f32 1.0, %s147
        %v204 = vstv %s147
        %v205 = vmul.f32 %v204, %v189
        %v206 = vstv %s203
        %v207 = vmul.f32 %v206, %v202
        %v208 = vadd.f32 %v205, %v207
        %v209 = vmax.f32 %v208, 0.0
        %v210 = vmin.f32 %v209, 1.0
        %v211 = vmul.f32 %v204, %v193
        %v212 = vadd.f32 %v211, %v207
        %v213 = vmax.f32 %v212, 0.0
        %v214 = vmin.f32 %v213, 1.0
        %v215 = vmul.f32 %v204, %v197
        %v216 = vadd.f32 %v215, %v207
        %v217 = vmax.f32 %v216, 0.0
        %v218 = vmin.f32 %v217, 1.0
        %219 = vst [vmem:[%s139] sm:$0xff] %v210
        %s220 = scalar_lea.vmem %s139, 8 [#allocation7]
        %221 = vst [vmem:[%s220] sm:$0xff] %v214
        %s222 = scalar_lea.vmem %s139, 16 [#allocation7]
        %223 = vst [vmem:[%s222] sm:$0xff] %v218
        %p224 = scmp.gt.f32.partialorder %s141, 0.5
        // Predicated region
        $region29: #{tpu_custom_call.1} parent=23 // pred_check
          %p225 = pneg %p224
        $region30: #{tpu_custom_call.1} parent=23 // pred_check_branch
          %227 = sbr.rel (%p225) target = $region32
        $region31: #{tpu_custom_call.1} parent=23 // pred_region
          %v228 = vld [vmem:[%s139] sm:$0xff]
          %v229 = vld [vmem:[%s139 + $0x8] sm:$0xff]
          %v230 = vld [vmem:[%s139 + $0x10] sm:$0xff]
          %v231 = vmax.f32 %v228, %v229
          %v232 = vmax.f32 %v231, %v230
          %v233 = vmin.f32 %v228, %v229
          %v234 = vmin.f32 %v233, %v230
          %v235 = vsub.f32 %v232, %v234
          %vm236 = vcmp.eq.f32.partialorder %v232, 0.0
          %v237 = vsel %vm236, 1.0, %v232
          %v238 = vrcp.pop %v237
          %v239 = vmul.f32 %v235, %v238
          %vm240 = vcmp.eq.f32.partialorder %v235, 0.0
          %v241 = vsel %vm240, 1.0, %v235
          %v242 = vrcp.pop %v241
          %v243 = vmul.f32 1.0, %v242
          %v244 = vsub.f32 %v232, %v228
          %v245 = vmul.f32 %v244, %v243
          %v246 = vsub.f32 %v232, %v229
          %v247 = vmul.f32 %v246, %v243
          %v248 = vsub.f32 %v232, %v230
          %v249 = vmul.f32 %v248, %v243
          %vm250 = vcmp.eq.f32.partialorder %v232, %v228
          %v251 = vsub.f32 %v249, %v247
          %vm252 = vcmp.eq.f32.partialorder %v232, %v229
          %v253 = vadd.f32 %v245, 2.0
          %v254 = vsub.f32 %v253, %v249
          %v255 = vadd.f32 %v247, 4.0
          %v256 = vsub.f32 %v255, %v245
          %v257 = vsel %vm252, %v254, %v256
          %v258 = vsel %vm250, %v251, %v257
          %s259 = smul.f32 %s149, 6.0
          %s260 = sadd.f32 %s259, 6.0
          %v261 = vstv %s260
          %v262 = vadd.f32 %v258, %v261
          %v263 = vmul.f32 %v232, %v239
          %v264 = vadd.f32 %v262, 5.0
          %v265 = vmul.f32 %v264, 0.16666667
          %v266 = vfloor.f32 %v265
          %v267 = vmul.f32 %v266, 6.0
          %v268 = vsub.f32 %v264, %v267
          %v269 = vsub.f32 4.0, %v268
          %v270 = vmin.f32 %v268, %v269
          %v271 = vmax.f32 %v270, 0.0
          %v272 = vmin.f32 %v271, 1.0
          %v273 = vmul.f32 %v263, %v272
          %v274 = vsub.f32 %v232, %v273
          %275 = vst [vmem:[%s139] sm:$0xff] %v274
          %v276 = vadd.f32 %v262, 3.0
          %v277 = vmul.f32 %v276, 0.16666667
          %v278 = vfloor.f32 %v277
          %v279 = vmul.f32 %v278, 6.0
          %v280 = vsub.f32 %v276, %v279
          %v281 = vsub.f32 4.0, %v280
          %v282 = vmin.f32 %v280, %v281
          %v283 = vmax.f32 %v282, 0.0
          %v284 = vmin.f32 %v283, 1.0
          %v285 = vmul.f32 %v263, %v284
          %v286 = vsub.f32 %v232, %v285
          %287 = vst [vmem:[%s220] sm:$0xff] %v286
          %v288 = vadd.f32 %v262, 1.0
          %v289 = vmul.f32 %v288, 0.16666667
          %v290 = vfloor.f32 %v289
          %v291 = vmul.f32 %v290, 6.0
          %v292 = vsub.f32 %v288, %v291
          %v293 = vsub.f32 4.0, %v292
          %v294 = vmin.f32 %v292, %v293
          %v295 = vmax.f32 %v294, 0.0
          %v296 = vmin.f32 %v295, 1.0
          %v297 = vmul.f32 %v263, %v296
          %v298 = vsub.f32 %v232, %v297
          %299 = vst [vmem:[%s222] sm:$0xff] %v298
        $region32: #{tpu_custom_call.1} parent=23 // pred_fallthru
          _
        %v300 = vld [vmem:[%s139] sm:$0xff]
        %v301 = vld [vmem:[%s139 + $0x8] sm:$0xff]
        %v302 = vld [vmem:[%s139 + $0x10] sm:$0xff]
        %p303 = scmp.gt.f32.partialorder %s151, 0.5
        %v304 = vmul.f32 %v300, 0.299
        %v305 = vmul.f32 %v301, 0.587
        %v306 = vadd.f32 %v304, %v305
        %v307 = vmul.f32 %v302, 0.114
        %v308 = vadd.f32 %v306, %v307
        %s309 = scalar_select %p303, 1, 0
        %v310 = vstv %s309
        %vm311 = vcmp.eq.s32.totalorder %v310, 1
        %v312 = vsel %vm311, %v308, %v300
        %v313 = vsel %vm311, %v308, %v301
        %v314 = vsel %vm311, %v308, %v302
        %p315 = scmp.gt.f32.partialorder %s153, 0.5
        %vm316 = vcmp.lt.f32.partialorder %v312, 0.5
        %v317 = vsub.f32 1.0, %v312
        %v318 = vsel %vm316, %v312, %v317
        %s319 = scalar_select %p315, 1, 0
        %v320 = vstv %s319
        %vm321 = vcmp.eq.s32.totalorder %v320, 1
        %v322 = vsel %vm321, %v318, %v312
        %vm323 = vcmp.lt.f32.partialorder %v313, 0.5
        %v324 = vsub.f32 1.0, %v313
        %v325 = vsel %vm323, %v313, %v324
        %v326 = vsel %vm321, %v325, %v313
        %vm327 = vcmp.lt.f32.partialorder %v314, 0.5
        %v328 = vsub.f32 1.0, %v314
        %v329 = vsel %vm327, %v314, %v328
        %v330 = vsel %vm321, %v329, %v314
        %v331 = vsub.f32 %v322, 0.485
        %v332 = vmul.f32 %v331, 4.366812
        %333 = vst [vmem:[%s139] sm:$0xff] %v332
        %v334 = vsub.f32 %v326, 0.456
        %v335 = vmul.f32 %v334, 4.464286
        %336 = vst [vmem:[%s220] sm:$0xff] %v335
        %v337 = vsub.f32 %v330, 0.406
        %v338 = vmul.f32 %v337, 4.4444447
        %339 = vst [vmem:[%s222] sm:$0xff] %v338
        %s340 = sand.u32 %s57, 1
        %s341 = scalar_lea.sflag [#allocation6], %s340
        %s342 = sand.u32 %s57, 1
        %s343 = smul.addr %s342, 24
        %s344 = scalar_lea.vmem [#allocation7], %s343
        // Predicated region
        $region33: #{tpu_custom_call.1} parent=23 // pred_check
          %p345 = pneg %p67
        $region34: #{tpu_custom_call.1} parent=23 // pred_check_branch
          %347 = sbr.rel (%p345) target = $region36
        $region35: #{tpu_custom_call.1} parent=23 // pred_region
          %s349 = ssub.s32 384, 384
          %350 = vsyncadd %s341, %s349
          %s351 = smul.addr %s23, 3
          %s352 = smul.addr %s351, 128
          %s353 = scalar_lea.hbm %s2, %s352
          %s354 = sshll.u32 %s344, 4
          %s355 = int_to_ptr.vmem [resolvable:$true] %s354
          %360 = dma.vmem_to_hbm [thread:$0]  %s355, 384, %s353, %s341, 128, 128, 8
        $region36: #{tpu_custom_call.1} parent=23 // pred_fallthru
          _
      $region24: #{tpu_custom_call.1} parent=5 // pred_fallthru
        _
      %p361 = scmp.le.s32.totalorder 2, %s18
      // Predicated region
      $region37: #{tpu_custom_call.1} parent=5 // pred_check
        %p362 = pneg %p361
      $region38: #{tpu_custom_call.1} parent=5 // pred_check_branch
        %364 = sbr.rel (%p362) target = $region40
      $region39: #{tpu_custom_call.1} parent=5 // pred_region
        %s365 = ssub.s32 %s18, 2
        // Predicated region
        $region41: #{tpu_custom_call.1} parent=39 // pred_check
          %p366 = pneg %p73
        $region42: #{tpu_custom_call.1} parent=39 // pred_check_branch
          %368 = sbr.rel (%p366) target = $region44
        $region43: #{tpu_custom_call.1} parent=39 // pred_region
          %s369 = sand.u32 %s58, 1
          %s370 = scalar_lea.sflag [#allocation6], %s369
          %s371 = sand.u32 %s58, 1
          %s372 = smul.addr %s371, 24
          %s373 = scalar_lea.vmem [#allocation7], %s372
          %374 = dma.done %s370, 384
        $region44: #{tpu_custom_call.1} parent=39 // pred_fallthru
          _
      $region40: #{tpu_custom_call.1} parent=5 // pred_fallthru
        _
    $region6: #{tpu_custom_call.1} parent=1 // loop_footer
      %s22 = sadd.s32 1, %s18
    $region7: #{tpu_custom_call.1} parent=1 // loop_footer_branch
      %17 = sbr.rel target = $region3
    $region8: #{tpu_custom_call.1} parent=1 // loop_exit
      _
    %375 = vsyncpa [#allocation5], 1
    %s376 = scalar_lea.sflag [#allocation5], 1
    %377 = vsyncpa %s376, 1
    %378 = vsyncpa [#allocation6], 1
    %s379 = scalar_lea.sflag [#allocation6], 1
    %380 = vsyncpa %s379, 1

</llo_original>
